<compile_context>
chip_gen: v5e
topology: v5e:2x2
jax: 0.10.0
libtpu: 0.0.40
codegen_flags: <defaults>
</compile_context>

<pallas_src>
import functools

import jax
import jax.numpy as jnp
from jax import lax
from jax.experimental import pallas as pl
from jax.experimental.pallas import tpu as pltpu

EPS = 1e-3  # BatchNorm2d(112, eps=0.001)

_PARALLEL = getattr(pltpu, "PARALLEL", "parallel")
_ARBITRARY = getattr(pltpu, "ARBITRARY", "arbitrary")
_CORE_PARALLEL = getattr(pltpu, "CORE_PARALLEL", _PARALLEL)

# Fused path: x / add / out tiles, double-buffered, f32.
_FUSED_VMEM_BUDGET = 24 * 1024 * 1024
# Streaming fallback: VMEM budget for lane-tile sizing and hard lane cap.
_STREAM_VMEM_BUDGET = 24 * 1024 * 1024
_STREAM_MAX_LANES = 8192

_DEVICE_KIND = None


def _device_kind():
    global _DEVICE_KIND
    if _DEVICE_KIND is None:
        try:
            _DEVICE_KIND = jax.devices()[0].device_kind.lower()
        except Exception:  # pragma: no cover - defensive
            _DEVICE_KIND = ""
    return _DEVICE_KIND


def _round_up(x, m):
    return (x + m - 1) // m * m


def _pick_channel_blocking(c):
    """(c_block, channel-axis dimension semantic), generation aware.

    v5e / v6e have one TensorCore: one big channel block minimizes grid-step
    overhead.  v7x has two TensorCores: split C in half and request core-level
    sharding of the channel axis so both TCs work.
    """
    kind = _device_kind()
    multi_tc = ("v7" in kind) or ("7x" in kind)
    if multi_tc and c % 16 == 0:
        return c // 2, _CORE_PARALLEL
    return c, _PARALLEL


# ---------------------------------------------------------------------------
# Fused single-pass kernel (the path actually used for this module's shape).
# ---------------------------------------------------------------------------
def _bn_add_fused_kernel(x_ref, add_ref, gamma_ref, beta_ref, o_ref, *,
                         inv_count):
    x = x_ref[...].astype(jnp.float32)          # (c_block, S)
    a = add_ref[...].astype(jnp.float32)        # (c_block, S)

    mean = jnp.sum(x, axis=1, keepdims=True) * inv_count
    xc = x - mean                               # shifted -> better-conditioned var
    var = jnp.sum(xc * xc, axis=1, keepdims=True) * inv_count
    scale = gamma_ref[...] * lax.rsqrt(var + EPS)   # rsqrt -> EUP slot

    o_ref[...] = (xc * scale + (beta_ref[...] + a)).astype(o_ref.dtype)


def _fused_call(x_cs, a_cs, g, b, S, c_block, chan_sem, out_dtype):
    C = x_cs.shape[0]
    n_c = C // c_block
    kernel = functools.partial(_bn_add_fused_kernel, inv_count=1.0 / S)
    return pl.pallas_call(
        kernel,
        out_shape=jax.ShapeDtypeStruct((C, S), out_dtype),
        grid=(n_c,),
        in_specs=[
            pl.BlockSpec((c_block, S), lambda c: (c, 0)),   # x
            pl.BlockSpec((c_block, S), lambda c: (c, 0)),   # residual add
            pl.BlockSpec((c_block, 1), lambda c: (c, 0)),   # gamma
            pl.BlockSpec((c_block, 1), lambda c: (c, 0)),   # beta
        ],
        out_specs=pl.BlockSpec((c_block, S), lambda c: (c, 0)),
        compiler_params=pltpu.CompilerParams(
            dimension_semantics=(chan_sem,),
        ),
    )(x_cs, a_cs, g, b)


# ---------------------------------------------------------------------------
# Streaming two-phase fallback for large S (never used at this module's shape).
# ---------------------------------------------------------------------------
def _bn_add_stream_kernel(x_ref, add_ref, gamma_ref, beta_ref, o_ref,
                          sum_ref, sumsq_ref, scale_ref, bias_ref,
                          *, inv_count, n_s):
    s = pl.program_id(1)

    @pl.when(s < n_s)
    def _stats_phase():
        x = x_ref[...].astype(jnp.float32)

        @pl.when(s == 0)
        def _init():
            sum_ref[...] = jnp.zeros_like(sum_ref)
            sumsq_ref[...] = jnp.zeros_like(sumsq_ref)

        # TODO(synk): lane-dense (c_block, 128) partial accumulators would move
        # this per-tile reduce off the XLU; irrelevant for this module's S.
        sum_ref[...] += jnp.sum(x, axis=1, keepdims=True)
        sumsq_ref[...] += jnp.sum(x * x, axis=1, keepdims=True)

        @pl.when(s == n_s - 1)
        def _finalize_stats():
            mean = sum_ref[...] * inv_count
            var = sumsq_ref[...] * inv_count - mean * mean
            inv_std = lax.rsqrt(var + EPS)
            scale = gamma_ref[...] * inv_std
            scale_ref[...] = scale
            bias_ref[...] = beta_ref[...] - mean * scale

    @pl.when(s >= n_s)
    def _normalize_phase():
        x = x_ref[...].astype(jnp.float32)
        a = add_ref[...].astype(jnp.float32)
        o_ref[...] = (x * scale_ref[...] + (bias_ref[...] + a)).astype(o_ref.dtype)


def _streaming_call(x_cs, a_cs, g, b, S, c_block, chan_sem, out_dtype):
    C = x_cs.shape[0]
    n_c = C // c_block

    # Lane tile from VMEM budget: 3 streams (x, add, out) x 2 buffers x f32.
    per_lane_bytes = 3 * 2 * c_block * 4
    max_lanes = max(256, (_STREAM_VMEM_BUDGET // per_lane_bytes) // 128 * 128)
    s_block = int(min(max_lanes, _STREAM_MAX_LANES, _round_up(S, 128)))
    s_pad = _round_up(S, s_block)
    # TODO(synk): the zero-pad / tail-slice HBM passes could be removed with
    # explicit lane masking; only reached for very large S, so kept simple.
    if s_pad != S:
        x_cs = jnp.pad(x_cs, ((0, 0), (0, s_pad - S)))
        a_cs = jnp.pad(a_cs, ((0, 0), (0, s_pad - S)))
    n_s = s_pad // s_block

    kernel = functools.partial(_bn_add_stream_kernel, inv_count=1.0 / S, n_s=n_s)

    def x_index(c, s):
        return (c, s % n_s)

    def held_index(c, s):
        return (c, jnp.maximum(s - n_s, 0))

    out_cs = pl.pallas_call(
        kernel,
        out_shape=jax.ShapeDtypeStruct((C, s_pad), out_dtype),
        grid=(n_c, 2 * n_s),
        in_specs=[
            pl.BlockSpec((c_block, s_block), x_index),        # x (both phases)
            pl.BlockSpec((c_block, s_block), held_index),     # residual add
            pl.BlockSpec((c_block, 1), lambda c, s: (c, 0)),  # gamma
            pl.BlockSpec((c_block, 1), lambda c, s: (c, 0)),  # beta
        ],
        out_specs=pl.BlockSpec((c_block, s_block), held_index),
        scratch_shapes=[
            pltpu.VMEM((c_block, 1), jnp.float32),  # sum(x)
            pltpu.VMEM((c_block, 1), jnp.float32),  # sum(x*x)
            pltpu.VMEM((c_block, 1), jnp.float32),  # folded scale
            pltpu.VMEM((c_block, 1), jnp.float32),  # folded bias
        ],
        compiler_params=pltpu.CompilerParams(
            dimension_semantics=(chan_sem, _ARBITRARY),
            vmem_limit_bytes=32 * 1024 * 1024,
        ),
    )(x_cs, a_cs, g, b)
    return out_cs[:, :S]


# ---------------------------------------------------------------------------
# Public wrapper: training-mode BatchNorm2d(x134) + x121, NCHW in / NCHW out.
# ---------------------------------------------------------------------------
def batchnorm_add(x134, x121, gamma, beta):
    N, C, H, W = x134.shape
    S = N * H * W
    out_dtype = x134.dtype

    # NCHW -> (C, S).  For N == 1 this is a pure reshape (no transpose pass).
    if N == 1:
        x_cs = x134.reshape(C, S)
        a_cs = x121.reshape(C, S)
    else:
        x_cs = jnp.transpose(x134, (1, 0, 2, 3)).reshape(C, S)
        a_cs = jnp.transpose(x121, (1, 0, 2, 3)).reshape(C, S)

    g = gamma.reshape(C, 1).astype(jnp.float32)
    b = beta.reshape(C, 1).astype(jnp.float32)

    c_block, chan_sem = _pick_channel_blocking(C)

    # Fused single-pass path whenever a whole (c_block, S) tile fits the
    # VMEM budget (it does by a huge margin for this module: ~88 KB/tile).
    fused_bytes = 3 * 2 * c_block * _round_up(S, 128) * 4
    if fused_bytes <= _FUSED_VMEM_BUDGET:
        out_cs = _fused_call(x_cs, a_cs, g, b, S, c_block, chan_sem, out_dtype)
    else:
        out_cs = _streaming_call(x_cs, a_cs, g, b, S, c_block, chan_sem,
                                 out_dtype)

    if N == 1:
        return out_cs.reshape(N, C, H, W)
    return jnp.transpose(out_cs.reshape(C, N, H, W), (1, 0, 2, 3))


def _reference(x134, x121, gamma, beta):
    mean = jnp.mean(x134, axis=(0, 2, 3), keepdims=True)
    var = jnp.var(x134, axis=(0, 2, 3), keepdims=True)
    xhat = (x134 - mean) * lax.rsqrt(var + EPS)
    return xhat * gamma[None, :, None, None] + beta[None, :, None, None] + x121


if __name__ == "__main__":
    key = jax.random.PRNGKey(0)
    k1, k2, k3, k4 = jax.random.split(key, 4)

    # Shapes from the original module: x134, x121 are (1, 112, 14, 14).
    N, C, H, W = 1, 112, 14, 14
    x134 = jax.random.normal(k1, (N, C, H, W), dtype=jnp.float32)
    x121 = jax.random.normal(k2, (N, C, H, W), dtype=jnp.float32)
    gamma = 1.0 + 0.1 * jax.random.normal(k3, (C,), dtype=jnp.float32)
    beta = 0.1 * jax.random.normal(k4, (C,), dtype=jnp.float32)

    fn = jax.jit(batchnorm_add)
    out = jax.block_until_ready(fn(x134, x121, gamma, beta))

    ref = _reference(x134, x121, gamma, beta)
    assert out.shape == (N, C, H, W)
    max_err = float(jnp.max(jnp.abs(out - ref)))
    assert jnp.allclose(out, ref, atol=1e-4, rtol=1e-4), max_err
    print("KERNEL_OK")
</pallas_src>

<mosaic_0001>
module attributes {stable_mosaic.version = 11 : i64} {
  func.func @_bn_add_fused_kernel(%arg0: i32, %arg1: memref<112x196xf32, #tpu.memory_space<vmem>>, %arg2: memref<112x196xf32, #tpu.memory_space<vmem>>, %arg3: memref<112x1xf32, #tpu.memory_space<vmem>>, %arg4: memref<112x1xf32, #tpu.memory_space<vmem>>, %arg5: memref<112x196xf32, #tpu.memory_space<vmem>>) attributes {dimension_semantics = [#tpu.dimension_semantics<parallel>], iteration_bounds = array<i64: 1>, scalar_prefetch = 0 : i64, scratch_operands = 0 : i64, tpu.core_type = #tpu.core_type<tc>, window_params = [{transform_indices = @transform_0, window_bounds = array<i64: 112, 196>}, {transform_indices = @transform_1, window_bounds = array<i64: 112, 196>}, {transform_indices = @transform_2, window_bounds = array<i64: 112, 1>}, {transform_indices = @transform_3, window_bounds = array<i64: 112, 1>}, {transform_indices = @transform_4, window_bounds = array<i64: 112, 196>}]} {
    %c0 = arith.constant 0 : index
    %c0_0 = arith.constant 0 : index
    %0 = vector.load %arg1[%c0, %c0_0] : memref<112x196xf32, #tpu.memory_space<vmem>>, vector<112x196xf32>
    %c0_1 = arith.constant 0 : index
    %c0_2 = arith.constant 0 : index
    %1 = vector.load %arg2[%c0_1, %c0_2] : memref<112x196xf32, #tpu.memory_space<vmem>>, vector<112x196xf32>
    %cst = arith.constant dense<0.000000e+00> : vector<112xf32>
    %2 = vector.multi_reduction <add>, %0, %cst [1] : vector<112x196xf32> to vector<112xf32>
    %3 = vector.shape_cast %2 : vector<112xf32> to vector<112x1xf32>
    %cst_3 = arith.constant 0.00510204071 : f32
    %4 = vector.broadcast %cst_3 : f32 to vector<112x1xf32>
    %5 = arith.mulf %3, %4 : vector<112x1xf32>
    %6 = vector.broadcast %5 : vector<112x1xf32> to vector<112x196xf32>
    %7 = arith.subf %0, %6 : vector<112x196xf32>
    %8 = arith.mulf %7, %7 : vector<112x196xf32>
    %cst_4 = arith.constant dense<0.000000e+00> : vector<112xf32>
    %9 = vector.multi_reduction <add>, %8, %cst_4 [1] : vector<112x196xf32> to vector<112xf32>
    %10 = vector.shape_cast %9 : vector<112xf32> to vector<112x1xf32>
    %cst_5 = arith.constant 0.00510204071 : f32
    %11 = vector.broadcast %cst_5 : f32 to vector<112x1xf32>
    %12 = arith.mulf %10, %11 : vector<112x1xf32>
    %c0_6 = arith.constant 0 : index
    %c0_7 = arith.constant 0 : index
    %13 = vector.load %arg3[%c0_6, %c0_7] : memref<112x1xf32, #tpu.memory_space<vmem>>, vector<112x1xf32>
    %cst_8 = arith.constant 1.000000e-03 : f32
    %14 = vector.broadcast %cst_8 : f32 to vector<112x1xf32>
    %15 = arith.addf %12, %14 : vector<112x1xf32>
    %16 = math.rsqrt %15 : vector<112x1xf32>
    %17 = arith.mulf %13, %16 : vector<112x1xf32>
    %18 = vector.broadcast %17 : vector<112x1xf32> to vector<112x196xf32>
    %19 = arith.mulf %7, %18 : vector<112x196xf32>
    %c0_9 = arith.constant 0 : index
    %c0_10 = arith.constant 0 : index
    %20 = vector.load %arg4[%c0_9, %c0_10] : memref<112x1xf32, #tpu.memory_space<vmem>>, vector<112x1xf32>
    %21 = vector.broadcast %20 : vector<112x1xf32> to vector<112x196xf32>
    %22 = arith.addf %21, %1 : vector<112x196xf32>
    %23 = arith.addf %19, %22 : vector<112x196xf32>
    %c0_11 = arith.constant 0 : index
    %c0_12 = arith.constant 0 : index
    %24 = vector.load %arg5[%c0_11, %c0_12] : memref<112x196xf32, #tpu.memory_space<vmem>>, vector<112x196xf32>
    tpu.vector_store %arg5[%c0_11, %c0_12], %23 {strides = array<i32>} : memref<112x196xf32, #tpu.memory_space<vmem>>, vector<112x196xf32>,
    return
  }
  func.func @transform_0(%arg0: i32) -> (i32, i32) {
    %c0_i32 = arith.constant 0 : i32
    %c0_i32_0 = arith.constant 0 : i32
    return %arg0, %c0_i32 : i32, i32
  }
  func.func @transform_1(%arg0: i32) -> (i32, i32) {
    %c0_i32 = arith.constant 0 : i32
    %c0_i32_0 = arith.constant 0 : i32
    return %arg0, %c0_i32 : i32, i32
  }
  func.func @transform_2(%arg0: i32) -> (i32, i32) {
    %c0_i32 = arith.constant 0 : i32
    %c0_i32_0 = arith.constant 0 : i32
    return %arg0, %c0_i32 : i32, i32
  }
  func.func @transform_3(%arg0: i32) -> (i32, i32) {
    %c0_i32 = arith.constant 0 : i32
    %c0_i32_0 = arith.constant 0 : i32
    return %arg0, %c0_i32 : i32, i32
  }
  func.func @transform_4(%arg0: i32) -> (i32, i32) {
    %c0_i32 = arith.constant 0 : i32
    %c0_i32_0 = arith.constant 0 : i32
    return %arg0, %c0_i32 : i32, i32
  }
}

</mosaic_0001>

<llo_original>
// kernel: batchnorm_add.1
$region0: #{batchnorm_add.1}
  #allocation0 [shape = 'u32[]', space=smem, size = 0x4, offset = 0x4, fixed_abs, tag = 'smem constant byte address 0x4 - core index']
  #allocation1 [shape = 'u32[72,128]{1,0:T(1,128)}', space=vmem, size = 0x9000, scoped, tag = 'internal scratch']
  %s0 = inlined_call_operand.vmem [shape: f32[112,196], index: 0, kind: input, shape index: {}]
  %s1 = inlined_call_operand.vmem [shape: f32[112,196], index: 1, kind: input, shape index: {}]
  %s2 = inlined_call_operand.vmem [shape: f32[112,1], index: 2, kind: input, shape index: {}]
  %s3 = inlined_call_operand.vmem [shape: f32[112,1], index: 3, kind: input, shape index: {}]
  %s4 = inlined_call_operand.vmem [shape: f32[112,196], index: 4, kind: output, shape index: {}]
  %s5 = sld [smem:[#allocation0]]
  $region26: #{batchnorm_add.1} parent=0
    _
  %s7 = ssub.s32 1, %s5
  %s8 = scalar_select 0, %s7, %s5
  // Predicated region
  $region2: #{batchnorm_add.1} parent=0 // pred_check
    _
  $region3: #{batchnorm_add.1} parent=0 // pred_check_branch
    %10 = sbr.rel (0) target = $region5
  $region4: #{batchnorm_add.1} parent=0 // pred_region
    _
  $region5: #{batchnorm_add.1} parent=0 // pred_fallthru
    _
  // Predicated region
  $region6: #{batchnorm_add.1} parent=0 // pred_check
    _
  $region7: #{batchnorm_add.1} parent=0 // pred_check_branch
    %12 = sbr.rel (0) target = $region9
  $region8: #{batchnorm_add.1} parent=0 // pred_region
    _
  $region9: #{batchnorm_add.1} parent=0 // pred_fallthru
    _
  // Predicated region
  $region10: #{batchnorm_add.1} parent=0 // pred_check
    _
  $region11: #{batchnorm_add.1} parent=0 // pred_check_branch
    %14 = sbr.rel (0) target = $region13
  $region12: #{batchnorm_add.1} parent=0 // pred_region
    _
  $region13: #{batchnorm_add.1} parent=0 // pred_fallthru
    _
  // Predicated region
  $region14: #{batchnorm_add.1} parent=0 // pred_check
    _
  $region15: #{batchnorm_add.1} parent=0 // pred_check_branch
    %16 = sbr.rel (0) target = $region17
  $region16: #{batchnorm_add.1} parent=0 // pred_region
    _
  $region17: #{batchnorm_add.1} parent=0 // pred_fallthru
    _
  %v17 = vld [vmem:[%s0] sm:$0xff]
  %v18 = vld [vmem:[%s0 + $0x8] sm:$0xff]
  %v19 = vld [vmem:[%s0 + $0x10] sm:$0xff]
  %v20 = vld [vmem:[%s0 + $0x18] sm:$0xff]
  %v21 = vld [vmem:[%s0 + $0x20] sm:$0xff]
  %v22 = vld [vmem:[%s0 + $0x28] sm:$0xff]
  %v23 = vld [vmem:[%s0 + $0x30] sm:$0xff]
  %v24 = vld [vmem:[%s0 + $0x38] sm:$0xff]
  %v25 = vld [vmem:[%s0 + $0x40] sm:$0xff]
  %v26 = vld [vmem:[%s0 + $0x48] sm:$0xff]
  %v27 = vld [vmem:[%s0 + $0x50] sm:$0xff]
  %v28 = vld [vmem:[%s0 + $0x58] sm:$0xff]
  %v29 = vld [vmem:[%s0 + $0x60] sm:$0xff]
  %v30 = vld [vmem:[%s0 + $0x68] sm:$0xff]
  %v31 = vld [vmem:[%s0 + $0x70] sm:$0xff]
  %v32 = vld [vmem:[%s0 + $0x78] sm:$0xff]
  %v33 = vld [vmem:[%s0 + $0x80] sm:$0xff]
  %v34 = vld [vmem:[%s0 + $0x88] sm:$0xff]
  %v35 = vld [vmem:[%s0 + $0x90] sm:$0xff]
  %v36 = vld [vmem:[%s0 + $0x98] sm:$0xff]
  %v37 = vld [vmem:[%s0 + $0xa0] sm:$0xff]
  %v38 = vld [vmem:[%s0 + $0xa8] sm:$0xff]
  %v39 = vld [vmem:[%s0 + $0xb0] sm:$0xff]
  %v40 = vld [vmem:[%s0 + $0xb8] sm:$0xff]
  %v41 = vld [vmem:[%s0 + $0xc0] sm:$0xff]
  %v42 = vld [vmem:[%s0 + $0xc8] sm:$0xff]
  %v43 = vld [vmem:[%s0 + $0xd0] sm:$0xff]
  %v44 = vld [vmem:[%s0 + $0xd8] sm:$0xff]
  %v45 = vld [vmem:[%s1] sm:$0xff]
  %v46 = vld [vmem:[%s1 + $0x8] sm:$0xff]
  %v47 = vld [vmem:[%s1 + $0x10] sm:$0xff]
  %v48 = vld [vmem:[%s1 + $0x18] sm:$0xff]
  %v49 = vld [vmem:[%s1 + $0x20] sm:$0xff]
  %v50 = vld [vmem:[%s1 + $0x28] sm:$0xff]
  %v51 = vld [vmem:[%s1 + $0x30] sm:$0xff]
  %v52 = vld [vmem:[%s1 + $0x38] sm:$0xff]
  %v53 = vld [vmem:[%s1 + $0x40] sm:$0xff]
  %v54 = vld [vmem:[%s1 + $0x48] sm:$0xff]
  %v55 = vld [vmem:[%s1 + $0x50] sm:$0xff]
  %v56 = vld [vmem:[%s1 + $0x58] sm:$0xff]
  %v57 = vld [vmem:[%s1 + $0x60] sm:$0xff]
  %v58 = vld [vmem:[%s1 + $0x68] sm:$0xff]
  %v59 = vld [vmem:[%s1 + $0x70] sm:$0xff]
  %v60 = vld [vmem:[%s1 + $0x78] sm:$0xff]
  %v61 = vld [vmem:[%s1 + $0x80] sm:$0xff]
  %v62 = vld [vmem:[%s1 + $0x88] sm:$0xff]
  %v63 = vld [vmem:[%s1 + $0x90] sm:$0xff]
  %v64 = vld [vmem:[%s1 + $0x98] sm:$0xff]
  %v65 = vld [vmem:[%s1 + $0xa0] sm:$0xff]
  %v66 = vld [vmem:[%s1 + $0xa8] sm:$0xff]
  %v67 = vld [vmem:[%s1 + $0xb0] sm:$0xff]
  %v68 = vld [vmem:[%s1 + $0xb8] sm:$0xff]
  %v69 = vld [vmem:[%s1 + $0xc0] sm:$0xff]
  %v70 = vld [vmem:[%s1 + $0xc8] sm:$0xff]
  %v71 = vld [vmem:[%s1 + $0xd0] sm:$0xff]
  %v72 = vld [vmem:[%s1 + $0xd8] sm:$0xff]
  %vm73 = vcmask 556032
  %v74 = vsel %vm73, %v18, 0.0
  %v75 = vadd.f32 %v17, %v74
  %76 = vadd.xlane.f32.xlu0 %v75
  %v77 = vpop.xlane.xlu0 %76
  %v78 = vsel %vm73, %v20, 0.0
  %v79 = vadd.f32 %v19, %v78
  %80 = vadd.xlane.f32.xlu0 %v79
  %v81 = vpop.xlane.xlu0 %80
  %v82 = vsel %vm73, %v22, 0.0
  %v83 = vadd.f32 %v21, %v82
  %84 = vadd.xlane.f32.xlu0 %v83
  %v85 = vpop.xlane.xlu0 %84
  %v86 = vsel %vm73, %v24, 0.0
  %v87 = vadd.f32 %v23, %v86
  %88 = vadd.xlane.f32.xlu0 %v87
  %v89 = vpop.xlane.xlu0 %88
  %v90 = vsel %vm73, %v26, 0.0
  %v91 = vadd.f32 %v25, %v90
  %92 = vadd.xlane.f32.xlu0 %v91
  %v93 = vpop.xlane.xlu0 %92
  %v94 = vsel %vm73, %v28, 0.0
  %v95 = vadd.f32 %v27, %v94
  %96 = vadd.xlane.f32.xlu0 %v95
  %v97 = vpop.xlane.xlu0 %96
  %v98 = vsel %vm73, %v30, 0.0
  %v99 = vadd.f32 %v29, %v98
  %100 = vadd.xlane.f32.xlu0 %v99
  %v101 = vpop.xlane.xlu0 %100
  %v102 = vsel %vm73, %v32, 0.0
  %v103 = vadd.f32 %v31, %v102
  %104 = vadd.xlane.f32.xlu0 %v103
  %v105 = vpop.xlane.xlu0 %104
  %v106 = vsel %vm73, %v34, 0.0
  %v107 = vadd.f32 %v33, %v106
  %108 = vadd.xlane.f32.xlu0 %v107
  %v109 = vpop.xlane.xlu0 %108
  %v110 = vsel %vm73, %v36, 0.0
  %v111 = vadd.f32 %v35, %v110
  %112 = vadd.xlane.f32.xlu0 %v111
  %v113 = vpop.xlane.xlu0 %112
  %v114 = vsel %vm73, %v38, 0.0
  %v115 = vadd.f32 %v37, %v114
  %116 = vadd.xlane.f32.xlu0 %v115
  %v117 = vpop.xlane.xlu0 %116
  %v118 = vsel %vm73, %v40, 0.0
  %v119 = vadd.f32 %v39, %v118
  %120 = vadd.xlane.f32.xlu0 %v119
  %v121 = vpop.xlane.xlu0 %120
  %v122 = vsel %vm73, %v42, 0.0
  %v123 = vadd.f32 %v41, %v122
  %124 = vadd.xlane.f32.xlu0 %v123
  %v125 = vpop.xlane.xlu0 %124
  %v126 = vsel %vm73, %v44, 0.0
  %v127 = vadd.f32 %v43, %v126
  %128 = vadd.xlane.f32.xlu0 %v127
  %v129 = vpop.xlane.xlu0 %128
  %v130 = vmul.f32 %v77, 0.0051020407
  %v131 = vmul.f32 %v81, 0.0051020407
  %v132 = vmul.f32 %v85, 0.0051020407
  %v133 = vmul.f32 %v89, 0.0051020407
  %v134 = vmul.f32 %v93, 0.0051020407
  %v135 = vmul.f32 %v97, 0.0051020407
  %v136 = vmul.f32 %v101, 0.0051020407
  %v137 = vmul.f32 %v105, 0.0051020407
  %v138 = vmul.f32 %v109, 0.0051020407
  %v139 = vmul.f32 %v113, 0.0051020407
  %v140 = vmul.f32 %v117, 0.0051020407
  %v141 = vmul.f32 %v121, 0.0051020407
  %v142 = vmul.f32 %v125, 0.0051020407
  %v143 = vmul.f32 %v129, 0.0051020407
  %v144 = vsub.f32 %v17, %v130
  %v145 = vsub.f32 %v18, %v130
  %v146 = vsub.f32 %v19, %v131
  %v147 = vsub.f32 %v20, %v131
  %v148 = vsub.f32 %v21, %v132
  %v149 = vsub.f32 %v22, %v132
  %v150 = vsub.f32 %v23, %v133
  %v151 = vsub.f32 %v24, %v133
  %v152 = vsub.f32 %v25, %v134
  %v153 = vsub.f32 %v26, %v134
  %v154 = vsub.f32 %v27, %v135
  %v155 = vsub.f32 %v28, %v135
  %v156 = vsub.f32 %v29, %v136
  %v157 = vsub.f32 %v30, %v136
  %v158 = vsub.f32 %v31, %v137
  %v159 = vsub.f32 %v32, %v137
  %v160 = vsub.f32 %v33, %v138
  %v161 = vsub.f32 %v34, %v138
  %v162 = vsub.f32 %v35, %v139
  %v163 = vsub.f32 %v36, %v139
  %v164 = vsub.f32 %v37, %v140
  %v165 = vsub.f32 %v38, %v140
  %v166 = vsub.f32 %v39, %v141
  %v167 = vsub.f32 %v40, %v141
  %v168 = vsub.f32 %v41, %v142
  %v169 = vsub.f32 %v42, %v142
  %v170 = vsub.f32 %v43, %v143
  %v171 = vsub.f32 %v44, %v143
  %v172 = vmul.f32 %v144, %v144
  %v173 = vmul.f32 %v145, %v145
  %v174 = vmul.f32 %v146, %v146
  %v175 = vmul.f32 %v147, %v147
  %v176 = vmul.f32 %v148, %v148
  %v177 = vmul.f32 %v149, %v149
  %v178 = vmul.f32 %v150, %v150
  %v179 = vmul.f32 %v151, %v151
  %v180 = vmul.f32 %v152, %v152
  %v181 = vmul.f32 %v153, %v153
  %v182 = vmul.f32 %v154, %v154
  %v183 = vmul.f32 %v155, %v155
  %v184 = vmul.f32 %v156, %v156
  %v185 = vmul.f32 %v157, %v157
  %v186 = vmul.f32 %v158, %v158
  %v187 = vmul.f32 %v159, %v159
  %v188 = vmul.f32 %v160, %v160
  %v189 = vmul.f32 %v161, %v161
  %v190 = vmul.f32 %v162, %v162
  %v191 = vmul.f32 %v163, %v163
  %v192 = vmul.f32 %v164, %v164
  %v193 = vmul.f32 %v165, %v165
  %v194 = vmul.f32 %v166, %v166
  %v195 = vmul.f32 %v167, %v167
  %v196 = vmul.f32 %v168, %v168
  %v197 = vmul.f32 %v169, %v169
  %v198 = vmul.f32 %v170, %v170
  %v199 = vmul.f32 %v171, %v171
  %v200 = vsel %vm73, %v173, 0.0
  %v201 = vadd.f32 %v172, %v200
  %202 = vadd.xlane.f32.xlu0 %v201
  %v203 = vpop.xlane.xlu0 %202
  %v204 = vsel %vm73, %v175, 0.0
  %v205 = vadd.f32 %v174, %v204
  %206 = vadd.xlane.f32.xlu0 %v205
  %v207 = vpop.xlane.xlu0 %206
  %v208 = vsel %vm73, %v177, 0.0
  %v209 = vadd.f32 %v176, %v208
  %210 = vadd.xlane.f32.xlu0 %v209
  %v211 = vpop.xlane.xlu0 %210
  %v212 = vsel %vm73, %v179, 0.0
  %v213 = vadd.f32 %v178, %v212
  %214 = vadd.xlane.f32.xlu0 %v213
  %v215 = vpop.xlane.xlu0 %214
  %v216 = vsel %vm73, %v181, 0.0
  %v217 = vadd.f32 %v180, %v216
  %218 = vadd.xlane.f32.xlu0 %v217
  %v219 = vpop.xlane.xlu0 %218
  %v220 = vsel %vm73, %v183, 0.0
  %v221 = vadd.f32 %v182, %v220
  %222 = vadd.xlane.f32.xlu0 %v221
  %v223 = vpop.xlane.xlu0 %222
  %v224 = vsel %vm73, %v185, 0.0
  %v225 = vadd.f32 %v184, %v224
  %226 = vadd.xlane.f32.xlu0 %v225
  %v227 = vpop.xlane.xlu0 %226
  %v228 = vsel %vm73, %v187, 0.0
  %v229 = vadd.f32 %v186, %v228
  %230 = vadd.xlane.f32.xlu0 %v229
  %v231 = vpop.xlane.xlu0 %230
  %v232 = vsel %vm73, %v189, 0.0
  %v233 = vadd.f32 %v188, %v232
  %234 = vadd.xlane.f32.xlu0 %v233
  %v235 = vpop.xlane.xlu0 %234
  %v236 = vsel %vm73, %v191, 0.0
  %v237 = vadd.f32 %v190, %v236
  %238 = vadd.xlane.f32.xlu0 %v237
  %v239 = vpop.xlane.xlu0 %238
  %v240 = vsel %vm73, %v193, 0.0
  %v241 = vadd.f32 %v192, %v240
  %242 = vadd.xlane.f32.xlu0 %v241
  %v243 = vpop.xlane.xlu0 %242
  %v244 = vsel %vm73, %v195, 0.0
  %v245 = vadd.f32 %v194, %v244
  %246 = vadd.xlane.f32.xlu0 %v245
  %v247 = vpop.xlane.xlu0 %246
  %v248 = vsel %vm73, %v197, 0.0
  %v249 = vadd.f32 %v196, %v248
  %250 = vadd.xlane.f32.xlu0 %v249
  %v251 = vpop.xlane.xlu0 %250
  %v252 = vsel %vm73, %v199, 0.0
  %v253 = vadd.f32 %v198, %v252
  %254 = vadd.xlane.f32.xlu0 %v253
  %v255 = vpop.xlane.xlu0 %254
  %v256 = vmul.f32 %v203, 0.0051020407
  %v257 = vmul.f32 %v207, 0.0051020407
  %v258 = vmul.f32 %v211, 0.0051020407
  %v259 = vmul.f32 %v215, 0.0051020407
  %v260 = vmul.f32 %v219, 0.0051020407
  %v261 = vmul.f32 %v223, 0.0051020407
  %v262 = vmul.f32 %v227, 0.0051020407
  %v263 = vmul.f32 %v231, 0.0051020407
  %v264 = vmul.f32 %v235, 0.0051020407
  %v265 = vmul.f32 %v239, 0.0051020407
  %v266 = vmul.f32 %v243, 0.0051020407
  %v267 = vmul.f32 %v247, 0.0051020407
  %v268 = vmul.f32 %v251, 0.0051020407
  %v269 = vmul.f32 %v255, 0.0051020407
  %v270 = vld [vmem:[%s2] sm:$0xff]
  %v271 = vld [vmem:[%s2 + $0x8] sm:$0xff]
  %v272 = vld [vmem:[%s2 + $0x10] sm:$0xff]
  %v273 = vld [vmem:[%s2 + $0x18] sm:$0xff]
  %v274 = vld [vmem:[%s2 + $0x20] sm:$0xff]
  %v275 = vld [vmem:[%s2 + $0x28] sm:$0xff]
  %v276 = vld [vmem:[%s2 + $0x30] sm:$0xff]
  %v277 = vld [vmem:[%s2 + $0x38] sm:$0xff]
  %v278 = vld [vmem:[%s2 + $0x40] sm:$0xff]
  %v279 = vld [vmem:[%s2 + $0x48] sm:$0xff]
  %v280 = vld [vmem:[%s2 + $0x50] sm:$0xff]
  %v281 = vld [vmem:[%s2 + $0x58] sm:$0xff]
  %v282 = vld [vmem:[%s2 + $0x60] sm:$0xff]
  %v283 = vld [vmem:[%s2 + $0x68] sm:$0xff]
  %v284 = vadd.f32 %v256, 0.001
  %v285 = vadd.f32 %v257, 0.001
  %v286 = vadd.f32 %v258, 0.001
  %v287 = vadd.f32 %v259, 0.001
  %v288 = vadd.f32 %v260, 0.001
  %v289 = vadd.f32 %v261, 0.001
  %v290 = vadd.f32 %v262, 0.001
  %v291 = vadd.f32 %v263, 0.001
  %v292 = vadd.f32 %v264, 0.001
  %v293 = vadd.f32 %v265, 0.001
  %v294 = vadd.f32 %v266, 0.001
  %v295 = vadd.f32 %v267, 0.001
  %v296 = vadd.f32 %v268, 0.001
  %v297 = vadd.f32 %v269, 0.001
  %v298 = vrsqrt.pop %v284
  %v299 = vmul.f32 %v298, %v284
  %v300 = vmul.f32 %v299, %v298
  %v301 = vmul.f32 0.5, %v300
  %v302 = vsub.f32 1.5, %v301
  %v303 = vmul.f32 %v298, %v302
  %vm304 = vweird.f32 %v284
  %vm305 = vweird.f32 %v298
  %vm306 = vmor %vm304, %vm305
  %v307 = vsel %vm306, %v298, %v303
  %v308 = vrsqrt.pop %v285
  %v309 = vmul.f32 %v308, %v285
  %v310 = vmul.f32 %v309, %v308
  %v311 = vmul.f32 0.5, %v310
  %v312 = vsub.f32 1.5, %v311
  %v313 = vmul.f32 %v308, %v312
  %vm314 = vweird.f32 %v285
  %vm315 = vweird.f32 %v308
  %vm316 = vmor %vm314, %vm315
  %v317 = vsel %vm316, %v308, %v313
  %v318 = vrsqrt.pop %v286
  %v319 = vmul.f32 %v318, %v286
  %v320 = vmul.f32 %v319, %v318
  %v321 = vmul.f32 0.5, %v320
  %v322 = vsub.f32 1.5, %v321
  %v323 = vmul.f32 %v318, %v322
  %vm324 = vweird.f32 %v286
  %vm325 = vweird.f32 %v318
  %vm326 = vmor %vm324, %vm325
  %v327 = vsel %vm326, %v318, %v323
  %v328 = vrsqrt.pop %v287
  %v329 = vmul.f32 %v328, %v287
  %v330 = vmul.f32 %v329, %v328
  %v331 = vmul.f32 0.5, %v330
  %v332 = vsub.f32 1.5, %v331
  %v333 = vmul.f32 %v328, %v332
  %vm334 = vweird.f32 %v287
  %vm335 = vweird.f32 %v328
  %vm336 = vmor %vm334, %vm335
  %v337 = vsel %vm336, %v328, %v333
  %v338 = vrsqrt.pop %v288
  %v339 = vmul.f32 %v338, %v288
  %v340 = vmul.f32 %v339, %v338
  %v341 = vmul.f32 0.5, %v340
  %v342 = vsub.f32 1.5, %v341
  %v343 = vmul.f32 %v338, %v342
  %vm344 = vweird.f32 %v288
  %vm345 = vweird.f32 %v338
  %vm346 = vmor %vm344, %vm345
  %v347 = vsel %vm346, %v338, %v343
  %v348 = vrsqrt.pop %v289
  %v349 = vmul.f32 %v348, %v289
  %v350 = vmul.f32 %v349, %v348
  %v351 = vmul.f32 0.5, %v350
  %v352 = vsub.f32 1.5, %v351
  %v353 = vmul.f32 %v348, %v352
  %vm354 = vweird.f32 %v289
  %vm355 = vweird.f32 %v348
  %vm356 = vmor %vm354, %vm355
  %v357 = vsel %vm356, %v348, %v353
  %v358 = vrsqrt.pop %v290
  %v359 = vmul.f32 %v358, %v290
  %v360 = vmul.f32 %v359, %v358
  %v361 = vmul.f32 0.5, %v360
  %v362 = vsub.f32 1.5, %v361
  %v363 = vmul.f32 %v358, %v362
  %vm364 = vweird.f32 %v290
  %vm365 = vweird.f32 %v358
  %vm366 = vmor %vm364, %vm365
  %v367 = vsel %vm366, %v358, %v363
  %v368 = vrsqrt.pop %v291
  %v369 = vmul.f32 %v368, %v291
  %v370 = vmul.f32 %v369, %v368
  %v371 = vmul.f32 0.5, %v370
  %v372 = vsub.f32 1.5, %v371
  %v373 = vmul.f32 %v368, %v372
  %vm374 = vweird.f32 %v291
  %vm375 = vweird.f32 %v368
  %vm376 = vmor %vm374, %vm375
  %v377 = vsel %vm376, %v368, %v373
  %v378 = vrsqrt.pop %v292
  %v379 = vmul.f32 %v378, %v292
  %v380 = vmul.f32 %v379, %v378
  %v381 = vmul.f32 0.5, %v380
  %v382 = vsub.f32 1.5, %v381
  %v383 = vmul.f32 %v378, %v382
  %vm384 = vweird.f32 %v292
  %vm385 = vweird.f32 %v378
  %vm386 = vmor %vm384, %vm385
  %v387 = vsel %vm386, %v378, %v383
  %v388 = vrsqrt.pop %v293
  %v389 = vmul.f32 %v388, %v293
  %v390 = vmul.f32 %v389, %v388
  %v391 = vmul.f32 0.5, %v390
  %v392 = vsub.f32 1.5, %v391
  %v393 = vmul.f32 %v388, %v392
  %vm394 = vweird.f32 %v293
  %vm395 = vweird.f32 %v388
  %vm396 = vmor %vm394, %vm395
  %v397 = vsel %vm396, %v388, %v393
  %v398 = vrsqrt.pop %v294
  %v399 = vmul.f32 %v398, %v294
  %v400 = vmul.f32 %v399, %v398
  %v401 = vmul.f32 0.5, %v400
  %v402 = vsub.f32 1.5, %v401
  %v403 = vmul.f32 %v398, %v402
  %vm404 = vweird.f32 %v294
  %vm405 = vweird.f32 %v398
  %vm406 = vmor %vm404, %vm405
  %v407 = vsel %vm406, %v398, %v403
  %v408 = vrsqrt.pop %v295
  %v409 = vmul.f32 %v408, %v295
  %v410 = vmul.f32 %v409, %v408
  %v411 = vmul.f32 0.5, %v410
  %v412 = vsub.f32 1.5, %v411
  %v413 = vmul.f32 %v408, %v412
  %vm414 = vweird.f32 %v295
  %vm415 = vweird.f32 %v408
  %vm416 = vmor %vm414, %vm415
  %v417 = vsel %vm416, %v408, %v413
  %v418 = vrsqrt.pop %v296
  %v419 = vmul.f32 %v418, %v296
  %v420 = vmul.f32 %v419, %v418
  %v421 = vmul.f32 0.5, %v420
  %v422 = vsub.f32 1.5, %v421
  %v423 = vmul.f32 %v418, %v422
  %vm424 = vweird.f32 %v296
  %vm425 = vweird.f32 %v418
  %vm426 = vmor %vm424, %vm425
  %v427 = vsel %vm426, %v418, %v423
  %v428 = vrsqrt.pop %v297
  %v429 = vmul.f32 %v428, %v297
  %v430 = vmul.f32 %v429, %v428
  %v431 = vmul.f32 0.5, %v430
  %v432 = vsub.f32 1.5, %v431
  %v433 = vmul.f32 %v428, %v432
  %vm434 = vweird.f32 %v297
  %vm435 = vweird.f32 %v428
  %vm436 = vmor %vm434, %vm435
  %v437 = vsel %vm436, %v428, %v433
  %v438 = vmul.f32 %v270, %v307
  %v439 = vmul.f32 %v271, %v317
  %v440 = vmul.f32 %v272, %v327
  %v441 = vmul.f32 %v273, %v337
  %v442 = vmul.f32 %v274, %v347
  %v443 = vmul.f32 %v275, %v357
  %v444 = vmul.f32 %v276, %v367
  %v445 = vmul.f32 %v277, %v377
  %v446 = vmul.f32 %v278, %v387
  %v447 = vmul.f32 %v279, %v397
  %v448 = vmul.f32 %v280, %v407
  %v449 = vmul.f32 %v281, %v417
  %v450 = vmul.f32 %v282, %v427
  %v451 = vmul.f32 %v283, %v437
  %453 = vset.pattern.permute.xlu0 0
  %454 = vperm.xlu0 %453, %v438
  %v455 = vpop.permute.xlu0 %454
  %458 = vset.pattern.permute.xlu0 0
  %459 = vperm.xlu0 %458, %v439
  %v460 = vpop.permute.xlu0 %459
  %463 = vset.pattern.permute.xlu0 0
  %464 = vperm.xlu0 %463, %v440
  %v465 = vpop.permute.xlu0 %464
  %468 = vset.pattern.permute.xlu0 0
  %469 = vperm.xlu0 %468, %v441
  %v470 = vpop.permute.xlu0 %469
  %473 = vset.pattern.permute.xlu0 0
  %474 = vperm.xlu0 %473, %v442
  %v475 = vpop.permute.xlu0 %474
  %478 = vset.pattern.permute.xlu0 0
  %479 = vperm.xlu0 %478, %v443
  %v480 = vpop.permute.xlu0 %479
  %483 = vset.pattern.permute.xlu0 0
  %484 = vperm.xlu0 %483, %v444
  %v485 = vpop.permute.xlu0 %484
  %488 = vset.pattern.permute.xlu0 0
  %489 = vperm.xlu0 %488, %v445
  %v490 = vpop.permute.xlu0 %489
  %493 = vset.pattern.permute.xlu0 0
  %494 = vperm.xlu0 %493, %v446
  %v495 = vpop.permute.xlu0 %494
  %498 = vset.pattern.permute.xlu0 0
  %499 = vperm.xlu0 %498, %v447
  %v500 = vpop.permute.xlu0 %499
  %503 = vset.pattern.permute.xlu0 0
  %504 = vperm.xlu0 %503, %v448
  %v505 = vpop.permute.xlu0 %504
  %508 = vset.pattern.permute.xlu0 0
  %509 = vperm.xlu0 %508, %v449
  %v510 = vpop.permute.xlu0 %509
  %513 = vset.pattern.permute.xlu0 0
  %514 = vperm.xlu0 %513, %v450
  %v515 = vpop.permute.xlu0 %514
  %518 = vset.pattern.permute.xlu0 0
  %519 = vperm.xlu0 %518, %v451
  %v520 = vpop.permute.xlu0 %519
  %v522 = vmul.f32 %v144, %v455
  %v523 = vmul.f32 %v145, %v455
  %v524 = vmul.f32 %v146, %v460
  %v525 = vmul.f32 %v147, %v460
  %v526 = vmul.f32 %v148, %v465
  %v527 = vmul.f32 %v149, %v465
  %v528 = vmul.f32 %v150, %v470
  %v529 = vmul.f32 %v151, %v470
  %v530 = vmul.f32 %v152, %v475
  %v531 = vmul.f32 %v153, %v475
  %v532 = vmul.f32 %v154, %v480
  %v533 = vmul.f32 %v155, %v480
  %v534 = vmul.f32 %v156, %v485
  %v535 = vmul.f32 %v157, %v485
  %v536 = vmul.f32 %v158, %v490
  %v537 = vmul.f32 %v159, %v490
  %v538 = vmul.f32 %v160, %v495
  %v539 = vmul.f32 %v161, %v495
  %v540 = vmul.f32 %v162, %v500
  %v541 = vmul.f32 %v163, %v500
  %v542 = vmul.f32 %v164, %v505
  %v543 = vmul.f32 %v165, %v505
  %v544 = vmul.f32 %v166, %v510
  %v545 = vmul.f32 %v167, %v510
  %v546 = vmul.f32 %v168, %v515
  %v547 = vmul.f32 %v169, %v515
  %v548 = vmul.f32 %v170, %v520
  %v549 = vmul.f32 %v171, %v520
  %v550 = vld [vmem:[%s3] sm:$0xff]
  %v551 = vld [vmem:[%s3 + $0x8] sm:$0xff]
  %v552 = vld [vmem:[%s3 + $0x10] sm:$0xff]
  %v553 = vld [vmem:[%s3 + $0x18] sm:$0xff]
  %v554 = vld [vmem:[%s3 + $0x20] sm:$0xff]
  %v555 = vld [vmem:[%s3 + $0x28] sm:$0xff]
  %v556 = vld [vmem:[%s3 + $0x30] sm:$0xff]
  %v557 = vld [vmem:[%s3 + $0x38] sm:$0xff]
  %v558 = vld [vmem:[%s3 + $0x40] sm:$0xff]
  %v559 = vld [vmem:[%s3 + $0x48] sm:$0xff]
  %v560 = vld [vmem:[%s3 + $0x50] sm:$0xff]
  %v561 = vld [vmem:[%s3 + $0x58] sm:$0xff]
  %v562 = vld [vmem:[%s3 + $0x60] sm:$0xff]
  %v563 = vld [vmem:[%s3 + $0x68] sm:$0xff]
  %565 = vset.pattern.permute.xlu0 0
  %566 = vperm.xlu0 %565, %v550
  %v567 = vpop.permute.xlu0 %566
  %570 = vset.pattern.permute.xlu0 0
  %571 = vperm.xlu0 %570, %v551
  %v572 = vpop.permute.xlu0 %571
  %575 = vset.pattern.permute.xlu0 0
  %576 = vperm.xlu0 %575, %v552
  %v577 = vpop.permute.xlu0 %576
  %580 = vset.pattern.permute.xlu0 0
  %581 = vperm.xlu0 %580, %v553
  %v582 = vpop.permute.xlu0 %581
  %585 = vset.pattern.permute.xlu0 0
  %586 = vperm.xlu0 %585, %v554
  %v587 = vpop.permute.xlu0 %586
  %590 = vset.pattern.permute.xlu0 0
  %591 = vperm.xlu0 %590, %v555
  %v592 = vpop.permute.xlu0 %591
  %595 = vset.pattern.permute.xlu0 0
  %596 = vperm.xlu0 %595, %v556
  %v597 = vpop.permute.xlu0 %596
  %600 = vset.pattern.permute.xlu0 0
  %601 = vperm.xlu0 %600, %v557
  %v602 = vpop.permute.xlu0 %601
  %605 = vset.pattern.permute.xlu0 0
  %606 = vperm.xlu0 %605, %v558
  %v607 = vpop.permute.xlu0 %606
  %610 = vset.pattern.permute.xlu0 0
  %611 = vperm.xlu0 %610, %v559
  %v612 = vpop.permute.xlu0 %611
  %615 = vset.pattern.permute.xlu0 0
  %616 = vperm.xlu0 %615, %v560
  %v617 = vpop.permute.xlu0 %616
  %620 = vset.pattern.permute.xlu0 0
  %621 = vperm.xlu0 %620, %v561
  %v622 = vpop.permute.xlu0 %621
  %625 = vset.pattern.permute.xlu0 0
  %626 = vperm.xlu0 %625, %v562
  %v627 = vpop.permute.xlu0 %626
  %630 = vset.pattern.permute.xlu0 0
  %631 = vperm.xlu0 %630, %v563
  %v632 = vpop.permute.xlu0 %631
  %v634 = vadd.f32 %v567, %v45
  %v635 = vadd.f32 %v567, %v46
  %v636 = vadd.f32 %v572, %v47
  %v637 = vadd.f32 %v572, %v48
  %v638 = vadd.f32 %v577, %v49
  %v639 = vadd.f32 %v577, %v50
  %v640 = vadd.f32 %v582, %v51
  %v641 = vadd.f32 %v582, %v52
  %v642 = vadd.f32 %v587, %v53
  %v643 = vadd.f32 %v587, %v54
  %v644 = vadd.f32 %v592, %v55
  %v645 = vadd.f32 %v592, %v56
  %v646 = vadd.f32 %v597, %v57
  %v647 = vadd.f32 %v597, %v58
  %v648 = vadd.f32 %v602, %v59
  %v649 = vadd.f32 %v602, %v60
  %v650 = vadd.f32 %v607, %v61
  %v651 = vadd.f32 %v607, %v62
  %v652 = vadd.f32 %v612, %v63
  %v653 = vadd.f32 %v612, %v64
  %v654 = vadd.f32 %v617, %v65
  %v655 = vadd.f32 %v617, %v66
  %v656 = vadd.f32 %v622, %v67
  %v657 = vadd.f32 %v622, %v68
  %v658 = vadd.f32 %v627, %v69
  %v659 = vadd.f32 %v627, %v70
  %v660 = vadd.f32 %v632, %v71
  %v661 = vadd.f32 %v632, %v72
  %v662 = vadd.f32 %v522, %v634
  %v663 = vadd.f32 %v523, %v635
  %v664 = vadd.f32 %v524, %v636
  %v665 = vadd.f32 %v525, %v637
  %v666 = vadd.f32 %v526, %v638
  %v667 = vadd.f32 %v527, %v639
  %v668 = vadd.f32 %v528, %v640
  %v669 = vadd.f32 %v529, %v641
  %v670 = vadd.f32 %v530, %v642
  %v671 = vadd.f32 %v531, %v643
  %v672 = vadd.f32 %v532, %v644
  %v673 = vadd.f32 %v533, %v645
  %v674 = vadd.f32 %v534, %v646
  %v675 = vadd.f32 %v535, %v647
  %v676 = vadd.f32 %v536, %v648
  %v677 = vadd.f32 %v537, %v649
  %v678 = vadd.f32 %v538, %v650
  %v679 = vadd.f32 %v539, %v651
  %v680 = vadd.f32 %v540, %v652
  %v681 = vadd.f32 %v541, %v653
  %v682 = vadd.f32 %v542, %v654
  %v683 = vadd.f32 %v543, %v655
  %v684 = vadd.f32 %v544, %v656
  %v685 = vadd.f32 %v545, %v657
  %v686 = vadd.f32 %v546, %v658
  %v687 = vadd.f32 %v547, %v659
  %v688 = vadd.f32 %v548, %v660
  %v689 = vadd.f32 %v549, %v661
  %690 = vst [vmem:[%s4] sm:$0xff] %v662
  %691 = vst.msk [vmem:[%s4 + $0x8] sm:$0xff] %vm73, %v663
  %692 = vst [vmem:[%s4 + $0x10] sm:$0xff] %v664
  %693 = vst.msk [vmem:[%s4 + $0x18] sm:$0xff] %vm73, %v665
  %694 = vst [vmem:[%s4 + $0x20] sm:$0xff] %v666
  %695 = vst.msk [vmem:[%s4 + $0x28] sm:$0xff] %vm73, %v667
  %696 = vst [vmem:[%s4 + $0x30] sm:$0xff] %v668
  %697 = vst.msk [vmem:[%s4 + $0x38] sm:$0xff] %vm73, %v669
  %698 = vst [vmem:[%s4 + $0x40] sm:$0xff] %v670
  %699 = vst.msk [vmem:[%s4 + $0x48] sm:$0xff] %vm73, %v671
  %700 = vst [vmem:[%s4 + $0x50] sm:$0xff] %v672
  %701 = vst.msk [vmem:[%s4 + $0x58] sm:$0xff] %vm73, %v673
  %702 = vst [vmem:[%s4 + $0x60] sm:$0xff] %v674
  %703 = vst.msk [vmem:[%s4 + $0x68] sm:$0xff] %vm73, %v675
  %704 = vst [vmem:[%s4 + $0x70] sm:$0xff] %v676
  %705 = vst.msk [vmem:[%s4 + $0x78] sm:$0xff] %vm73, %v677
  %706 = vst [vmem:[%s4 + $0x80] sm:$0xff] %v678
  %707 = vst.msk [vmem:[%s4 + $0x88] sm:$0xff] %vm73, %v679
  %708 = vst [vmem:[%s4 + $0x90] sm:$0xff] %v680
  %709 = vst.msk [vmem:[%s4 + $0x98] sm:$0xff] %vm73, %v681
  %710 = vst [vmem:[%s4 + $0xa0] sm:$0xff] %v682
  %711 = vst.msk [vmem:[%s4 + $0xa8] sm:$0xff] %vm73, %v683
  %712 = vst [vmem:[%s4 + $0xb0] sm:$0xff] %v684
  %713 = vst.msk [vmem:[%s4 + $0xb8] sm:$0xff] %vm73, %v685
  %714 = vst [vmem:[%s4 + $0xc0] sm:$0xff] %v686
  %715 = vst.msk [vmem:[%s4 + $0xc8] sm:$0xff] %vm73, %v687
  %716 = vst [vmem:[%s4 + $0xd0] sm:$0xff] %v688
  %717 = vst.msk [vmem:[%s4 + $0xd8] sm:$0xff] %vm73, %v689
  // Predicated region
  $region18: #{batchnorm_add.1} parent=0 // pred_check
    _
  $region19: #{batchnorm_add.1} parent=0 // pred_check_branch
    %719 = sbr.rel (0) target = $region21
  $region20: #{batchnorm_add.1} parent=0 // pred_region
    _
  $region21: #{batchnorm_add.1} parent=0 // pred_fallthru
    _
  // Predicated region
  $region22: #{batchnorm_add.1} parent=0 // pred_check
    _
  $region23: #{batchnorm_add.1} parent=0 // pred_check_branch
    %721 = sbr.rel (0) target = $region25
  $region24: #{batchnorm_add.1} parent=0 // pred_region
    _
  $region25: #{batchnorm_add.1} parent=0 // pred_fallthru
    _

</llo_original>
